<compile_context>
chip_gen: v7x
topology: tpu7x:2x2x1
jax: 0.10.0
libtpu: 0.0.40
codegen_flags: <defaults>
</compile_context>

<pallas_src>
import math
import functools

import jax
import jax.numpy as jnp
import numpy as np
from jax.experimental import pallas as pl
from jax.experimental.pallas import tpu as pltpu

_F32 = jnp.float32
_BF16 = jnp.bfloat16
_LN_EPS = 1e-5


# --------------------------------------------------------------------------- #
# Stage 1: K / V projection kernel (one grid step per batch element)
# --------------------------------------------------------------------------- #
def kv_proj_kernel(x_ref, wk_ref, bk_ref, wv_ref, bv_ref, k_ref, v_ref):
    xb = x_ref[...]                                                  # (S, D) bf16
    k = jnp.dot(xb, wk_ref[...], preferred_element_type=_F32) + bk_ref[...]
    v = jnp.dot(xb, wv_ref[...], preferred_element_type=_F32) + bv_ref[...]
    k_ref[...] = k.astype(_BF16)
    v_ref[...] = v.astype(_BF16)


def _kv_projection(x_bf16, wk, bk, wv, bv, vmem_cap):
    B, S, D = x_bf16.shape
    # Rough VMEM need: double-buffered blocks + f32 matmul results.
    est = 2 * (3 * S * D * 2 + 2 * D * D * 2 + 2 * D * 4) + 2 * S * D * 4
    vmem_limit = int(min(max(int(1.25 * est), 32 * 1024 * 1024),
                         int(0.9 * vmem_cap)))

    const2 = lambda b: (0, 0)
    return pl.pallas_call(
        kv_proj_kernel,
        out_shape=(jax.ShapeDtypeStruct((B, S, D), _BF16),
                   jax.ShapeDtypeStruct((B, S, D), _BF16)),
        grid_spec=pltpu.PrefetchScalarGridSpec(
            num_scalar_prefetch=0,
            grid=(B,),
            in_specs=[
                pl.BlockSpec((pl.Squeezed(), S, D), lambda b: (b, 0, 0)),   # x (bf16)
                pl.BlockSpec((D, D), const2),                               # Wk
                pl.BlockSpec((1, D), const2),                               # bk
                pl.BlockSpec((D, D), const2),                               # Wv
                pl.BlockSpec((1, D), const2),                               # bv
            ],
            out_specs=[
                pl.BlockSpec((pl.Squeezed(), S, D), lambda b: (b, 0, 0)),   # K
                pl.BlockSpec((pl.Squeezed(), S, D), lambda b: (b, 0, 0)),   # V
            ],
        ),
        compiler_params=pltpu.CompilerParams(
            dimension_semantics=("parallel",),
            vmem_limit_bytes=vmem_limit,
        ),
    )(x_bf16, wk, bk, wv, bv)


# --------------------------------------------------------------------------- #
# Stage 2: fused attention + LayerNorm + FFN block kernel
# --------------------------------------------------------------------------- #
def fft_block_kernel(
    x_ref, k_ref, v_ref,
    wq_ref, bq_ref, wo_ref, bo_ref,
    g1_ref, beta1_ref, w1_ref, b1_ref, w2_ref, b2_ref, g2_ref, beta2_ref,
    out_ref,
    *, n_heads: int,
):
    """Grid = (batch, query_tile). bf16 MXU matmuls, f32 accumulation; softmax
    and LayerNorm element-wise math in f32."""
    tS, D = x_ref.shape
    H = n_heads
    dk = D // H

    x = x_ref[...]                                                   # (tS, D) f32
    xb = x.astype(_BF16)

    # ---- Q projection: full-width matmul; 1/sqrt(dk) pre-folded into Wq/bq ----
    q = jnp.dot(xb, wq_ref[...], preferred_element_type=_F32) + bq_ref[...]
    qh = jnp.transpose(q.reshape(tS, H, dk), (1, 0, 2)).astype(_BF16)  # (H,tS,dk)

    k = k_ref[...]                                                   # (H, dk, S) bf16
    v = v_ref[...]                                                   # (H, dk, S) bf16

    # ---- scores: batched NN matmul, lane-dense S minor ----
    s = jnp.einsum("hqd,hdk->hqk", qh, k, preferred_element_type=_F32)  # (H,tS,S)
    m = jnp.max(s, axis=-1, keepdims=True)
    p = jnp.exp(s - m)                                               # unnormalized
    denom = jnp.sum(p, axis=-1, keepdims=True)                       # (H, tS, 1)

    # ---- P@V: batched NT matmul (contract over S, minor on both) ----
    o = jnp.einsum("hqk,hdk->hqd", p.astype(_BF16), v,
                   preferred_element_type=_F32)                      # (H, tS, dk)
    # Deferred softmax normalization: only touches (H,tS,dk); EUP vrcp slot.
    o = o * pl.reciprocal(denom, approx=True)

    # ---- head merge + output projection (single full-width matmul) ----
    o_m = jnp.transpose(o, (1, 0, 2)).reshape(tS, D)                 # (tS, D) f32
    attn = jnp.dot(o_m.astype(_BF16), wo_ref[...],
                   preferred_element_type=_F32) + bo_ref[...]

    # ---- residual + LayerNorm 1 (f32) ----
    y = x + attn
    mu = jnp.mean(y, axis=-1, keepdims=True)
    var = jnp.mean((y - mu) ** 2, axis=-1, keepdims=True)
    y = (y - mu) * jax.lax.rsqrt(var + _LN_EPS) * g1_ref[...] + beta1_ref[...]

    # ---- feed-forward: Linear -> ReLU -> Linear ----
    h1 = jnp.dot(y.astype(_BF16), w1_ref[...],
                 preferred_element_type=_F32) + b1_ref[...]
    h1 = jnp.maximum(h1, 0.0)
    ff = jnp.dot(h1.astype(_BF16), w2_ref[...],
                 preferred_element_type=_F32) + b2_ref[...]

    # ---- residual + LayerNorm 2 (f32) ----
    z = y + ff
    mu2 = jnp.mean(z, axis=-1, keepdims=True)
    var2 = jnp.mean((z - mu2) ** 2, axis=-1, keepdims=True)
    out_ref[...] = (z - mu2) * jax.lax.rsqrt(var2 + _LN_EPS) * g2_ref[...] + beta2_ref[...]


# --------------------------------------------------------------------------- #
# Host-side helpers
# --------------------------------------------------------------------------- #
def _prepare_params(params, n_heads):
    D = params["wq"].shape[0]
    dk = D // n_heads
    inv_scale = 1.0 / math.sqrt(dk)
    return dict(
        # fold the attention scale into the Q projection (review item 3)
        wq=(params["wq"] * inv_scale).astype(_BF16),
        bq=(params["bq"] * inv_scale).astype(_F32),
        wk=params["wk"].astype(_BF16), bk=params["bk"].astype(_F32),
        wv=params["wv"].astype(_BF16), bv=params["bv"].astype(_F32),
        wo=params["wo"].astype(_BF16), bo=params["bo"].astype(_F32),
        g1=params["g1"].astype(_F32), beta1=params["beta1"].astype(_F32),
        w1=params["w1"].astype(_BF16), b1=params["b1"].astype(_F32),
        w2=params["w2"].astype(_BF16), b2=params["b2"].astype(_F32),
        g2=params["g2"].astype(_F32), beta2=params["beta2"].astype(_F32),
    )


def _physical_vmem_bytes():
    try:
        return int(pltpu.get_tpu_info().vmem_capacity_bytes)
    except Exception:
        return 64 * 1024 * 1024   # conservative: v7x per-TC VMEM


def _main_vmem_estimate(tS, S, D, d_ff, H):
    # Double-buffered pipelined blocks.
    blocks = 2 * (tS * D * 4) * 2                         # x in + out (f32)
    blocks += 2 * 2 * (D * S * 2)                          # K and V (bf16, H*dk = D)
    blocks += 2 * ((2 * D * D + 2 * D * d_ff) * 2          # Wq, Wo, W1, W2 (bf16)
                   + (7 * D + 2 * d_ff) * 4)               # biases + LN params (f32)
    # Live intermediates inside one body invocation.
    inter = 2 * (H * tS * S * 4) + H * tS * S * 2          # s, exp(s) f32 + bf16 copy
    inter += 4 * (tS * D * 4) + 2 * (tS * D * 2)           # q / o / y / z + bf16 views
    inter += tS * d_ff * 4 + tS * d_ff * 2                 # FFN hidden
    return blocks + inter


def _pick_seq_tile(S, D, d_ff, H, vmem_cap):
    # Largest aligned query tile whose estimated footprint stays well inside
    # the physical VMEM of this generation (v7x 64 MiB vs v5e/v6e 128 MiB).
    budget = int(0.45 * vmem_cap)
    if D % 128 == 0:
        for t in (512, 256, 128):
            if S > t and S % t == 0 and _main_vmem_estimate(t, S, D, d_ff, H) <= budget:
                return t
    # TODO(synk): non-tileable / unaligned (S, D) fall back to a full-sequence
    # tile; very long unaligned sequences may not fit VMEM.
    return S


def _build_main_call(B, S, D, d_ff, n_heads, tS, vmem_limit):
    dk = D // n_heads
    nq = S // tS

    def const(shape):
        return pl.BlockSpec(shape, lambda b, qi: (0,) * len(shape))

    in_specs = [
        pl.BlockSpec((pl.Squeezed(), tS, D), lambda b, qi: (b, qi, 0)),            # x
        pl.BlockSpec((pl.Squeezed(), n_heads, dk, S), lambda b, qi: (b, 0, 0, 0)), # K
        pl.BlockSpec((pl.Squeezed(), n_heads, dk, S), lambda b, qi: (b, 0, 0, 0)), # V
        const((D, D)), const((1, D)),                                              # Wq, bq
        const((D, D)), const((1, D)),                                              # Wo, bo
        const((1, D)), const((1, D)),                                              # LN1
        const((D, d_ff)), const((1, d_ff)),                                        # W1, b1
        const((d_ff, D)), const((1, D)),                                           # W2, b2
        const((1, D)), const((1, D)),                                              # LN2
    ]
    out_spec = pl.BlockSpec((pl.Squeezed(), tS, D), lambda b, qi: (b, qi, 0))

    cost = pl.CostEstimate(
        flops=B * S * (4 * D * D + 4 * S * D + 4 * D * d_ff),
        transcendentals=B * (n_heads * S * S + 2 * S),
        bytes_accessed=(2 * B * S * D * 4 + 2 * B * S * D * 2
                        + 2 * (2 * D * D + 2 * D * d_ff)),
    )

    return pl.pallas_call(
        functools.partial(fft_block_kernel, n_heads=n_heads),
        out_shape=jax.ShapeDtypeStruct((B, S, D), _F32),
        grid_spec=pltpu.PrefetchScalarGridSpec(
            num_scalar_prefetch=0,
            grid=(B, nq),
            in_specs=in_specs,
            out_specs=out_spec,
        ),
        compiler_params=pltpu.CompilerParams(
            # Both axes are independent now that K/V are plain inputs, so the
            # query-tile axis can be sharded across cores too (v7x dual-TC).
            dimension_semantics=("parallel", "parallel"),
            vmem_limit_bytes=vmem_limit,
        ),
        cost_estimate=cost,
    )


def fft_block(x, params, *, n_heads):
    B, S, D = x.shape
    assert D % n_heads == 0, "d_model must be divisible by n_heads"
    dk = D // n_heads
    d_ff = params["w1"].shape[1]
    x = x.astype(_F32)
    prep = _prepare_params(params, n_heads)
    vmem_cap = _physical_vmem_bytes()

    # Stage 1: K/V projection (hoisted out of the fused kernel).
    k_sd, v_sd = _kv_projection(x.astype(_BF16), prep["wk"], prep["bk"],
                                prep["wv"], prep["bv"], vmem_cap)

    # One host-side (XLA) relayout into the lane-dense (B, H, dk, S) head layout.
    def to_heads(t):
        return jnp.transpose(t.reshape(B, S, n_heads, dk), (0, 2, 3, 1))
    k_hds = to_heads(k_sd)
    v_hds = to_heads(v_sd)

    # Stage 2: fused attention + LN + FFN.
    tS = _pick_seq_tile(S, D, d_ff, n_heads, vmem_cap)
    est = _main_vmem_estimate(tS, S, D, d_ff, n_heads)
    vmem_limit = int(min(max(int(1.25 * est), 32 * 1024 * 1024),
                         int(0.9 * vmem_cap)))

    call = _build_main_call(B, S, D, d_ff, n_heads, tS, vmem_limit)
    return call(x, k_hds, v_hds,
                prep["wq"], prep["bq"], prep["wo"], prep["bo"],
                prep["g1"], prep["beta1"], prep["w1"], prep["b1"],
                prep["w2"], prep["b2"], prep["g2"], prep["beta2"])


# --------------------------------------------------------------------------- #
# Pure f32 reference (PyTorch FFTBlock eval-mode semantics)
# --------------------------------------------------------------------------- #
def reference_fft_block(x, p, n_heads):
    B, S, D = x.shape
    dk = D // n_heads
    q = x @ p["wq"] + p["bq"]
    k = x @ p["wk"] + p["bk"]
    v = x @ p["wv"] + p["bv"]

    def heads(t):
        return t.reshape(B, S, n_heads, dk).transpose(0, 2, 1, 3)

    qh, kh, vh = heads(q), heads(k), heads(v)
    s = jnp.einsum("bhqd,bhkd->bhqk", qh, kh) / math.sqrt(dk)
    a = jax.nn.softmax(s, axis=-1)
    o = jnp.einsum("bhqk,bhkd->bhqd", a, vh)
    o = o.transpose(0, 2, 1, 3).reshape(B, S, D)
    attn = o @ p["wo"] + p["bo"]

    def ln(z, g, b):
        mu = jnp.mean(z, -1, keepdims=True)
        var = jnp.mean((z - mu) ** 2, -1, keepdims=True)
        return (z - mu) * jax.lax.rsqrt(var + _LN_EPS) * g + b

    y = ln(x + attn, p["g1"], p["beta1"])
    h1 = jnp.maximum(y @ p["w1"] + p["b1"], 0.0)
    ff = h1 @ p["w2"] + p["b2"]
    return ln(y + ff, p["g2"], p["beta2"])


def init_params(key, d_model, d_ff):
    ks = jax.random.split(key, 12)
    sc = 0.05
    return {
        "wq": sc * jax.random.normal(ks[0], (d_model, d_model), _F32),
        "bq": sc * jax.random.normal(ks[1], (1, d_model), _F32),
        "wk": sc * jax.random.normal(ks[2], (d_model, d_model), _F32),
        "bk": sc * jax.random.normal(ks[3], (1, d_model), _F32),
        "wv": sc * jax.random.normal(ks[4], (d_model, d_model), _F32),
        "bv": sc * jax.random.normal(ks[5], (1, d_model), _F32),
        "wo": sc * jax.random.normal(ks[6], (d_model, d_model), _F32),
        "bo": sc * jax.random.normal(ks[7], (1, d_model), _F32),
        "g1": jnp.ones((1, d_model), _F32),
        "beta1": jnp.zeros((1, d_model), _F32),
        "w1": sc * jax.random.normal(ks[8], (d_model, d_ff), _F32),
        "b1": sc * jax.random.normal(ks[9], (1, d_ff), _F32),
        "w2": sc * jax.random.normal(ks[10], (d_ff, d_model), _F32),
        "b2": sc * jax.random.normal(ks[11], (1, d_model), _F32),
        "g2": jnp.ones((1, d_model), _F32),
        "beta2": jnp.zeros((1, d_model), _F32),
    }


if __name__ == "__main__":
    B, S, d_model, n_heads, d_ff = 2, 8, 32, 4, 64

    key = jax.random.PRNGKey(0)
    kx, kp = jax.random.split(key)
    x = jax.random.normal(kx, (B, S, d_model), _F32)
    params = init_params(kp, d_model, d_ff)

    out = fft_block(x, params, n_heads=n_heads)
    out = jax.block_until_ready(out)

    # Pure-f32 reference (true module semantics); tolerance reflects bf16
    # MXU operands with f32 accumulation in the kernel.
    ref = reference_fft_block(x, params, n_heads)
    np.testing.assert_allclose(np.asarray(out), np.asarray(ref), rtol=2e-2, atol=2e-2)

    print("KERNEL_OK")
</pallas_src>

<mosaic_0001>
module attributes {stable_mosaic.version = 11 : i64} {
  func.func @kv_proj_kernel(%arg0: i32, %arg1: memref<1x8x32xbf16, #tpu.memory_space<vmem>>, %arg2: memref<32x32xbf16, #tpu.memory_space<vmem>>, %arg3: memref<1x32xf32, #tpu.memory_space<vmem>>, %arg4: memref<32x32xbf16, #tpu.memory_space<vmem>>, %arg5: memref<1x32xf32, #tpu.memory_space<vmem>>, %arg6: memref<1x8x32xbf16, #tpu.memory_space<vmem>>, %arg7: memref<1x8x32xbf16, #tpu.memory_space<vmem>>) attributes {dimension_semantics = [#tpu.dimension_semantics<parallel>], iteration_bounds = array<i64: 2>, scalar_prefetch = 0 : i64, scratch_operands = 0 : i64, tpu.core_type = #tpu.core_type<tc>, window_params = [{transform_indices = @transform_0, window_bounds = array<i64: 1, 8, 32>}, {pipeline_mode = #tpu.pipeline_mode<synchronous>, transform_indices = @transform_1, window_bounds = array<i64: 32, 32>}, {pipeline_mode = #tpu.pipeline_mode<synchronous>, transform_indices = @transform_2, window_bounds = array<i64: 1, 32>}, {pipeline_mode = #tpu.pipeline_mode<synchronous>, transform_indices = @transform_3, window_bounds = array<i64: 32, 32>}, {pipeline_mode = #tpu.pipeline_mode<synchronous>, transform_indices = @transform_4, window_bounds = array<i64: 1, 32>}, {transform_indices = @transform_5, window_bounds = array<i64: 1, 8, 32>}, {transform_indices = @transform_6, window_bounds = array<i64: 1, 8, 32>}]} {
    %c0 = arith.constant 0 : index
    %c0_0 = arith.constant 0 : index
    %c0_1 = arith.constant 0 : index
    %0 = vector.load %arg1[%c0, %c0_0, %c0_1] : memref<1x8x32xbf16, #tpu.memory_space<vmem>>, vector<1x8x32xbf16>
    %1 = vector.shape_cast %0 : vector<1x8x32xbf16> to vector<8x32xbf16>
    %c0_2 = arith.constant 0 : index
    %c0_3 = arith.constant 0 : index
    %2 = vector.load %arg2[%c0_2, %c0_3] : memref<32x32xbf16, #tpu.memory_space<vmem>>, vector<32x32xbf16>
    %cst = arith.constant dense<0.000000e+00> : vector<8x32xf32>
    %3 = tpu.matmul %1, %2, %cst {dimension_numbers = #tpu.dot_dimension_numbers<[1], [0], [0], [1], [0, 0, 1, 1], [], []>} : vector<8x32xbf16>, vector<32x32xbf16>, vector<8x32xf32> -> vector<8x32xf32>
    %c0_4 = arith.constant 0 : index
    %c0_5 = arith.constant 0 : index
    %4 = vector.load %arg3[%c0_4, %c0_5] : memref<1x32xf32, #tpu.memory_space<vmem>>, vector<1x32xf32>
    %5 = vector.broadcast %4 : vector<1x32xf32> to vector<8x32xf32>
    %6 = arith.addf %3, %5 : vector<8x32xf32>
    %c0_6 = arith.constant 0 : index
    %c0_7 = arith.constant 0 : index
    %7 = vector.load %arg4[%c0_6, %c0_7] : memref<32x32xbf16, #tpu.memory_space<vmem>>, vector<32x32xbf16>
    %cst_8 = arith.constant dense<0.000000e+00> : vector<8x32xf32>
    %8 = tpu.matmul %1, %7, %cst_8 {dimension_numbers = #tpu.dot_dimension_numbers<[1], [0], [0], [1], [0, 0, 1, 1], [], []>} : vector<8x32xbf16>, vector<32x32xbf16>, vector<8x32xf32> -> vector<8x32xf32>
    %c0_9 = arith.constant 0 : index
    %c0_10 = arith.constant 0 : index
    %9 = vector.load %arg5[%c0_9, %c0_10] : memref<1x32xf32, #tpu.memory_space<vmem>>, vector<1x32xf32>
    %10 = vector.broadcast %9 : vector<1x32xf32> to vector<8x32xf32>
    %11 = arith.addf %8, %10 : vector<8x32xf32>
    %12 = arith.truncf %6 : vector<8x32xf32> to vector<8x32xbf16>
    %c0_11 = arith.constant 0 : index
    %c0_12 = arith.constant 0 : index
    %c0_13 = arith.constant 0 : index
    %13 = vector.load %arg6[%c0_11, %c0_12, %c0_13] : memref<1x8x32xbf16, #tpu.memory_space<vmem>>, vector<1x8x32xbf16>
    %14 = vector.shape_cast %13 : vector<1x8x32xbf16> to vector<8x32xbf16>
    %15 = vector.shape_cast %12 : vector<8x32xbf16> to vector<1x8x32xbf16>
    tpu.vector_store %arg6[%c0_11, %c0_12, %c0_13], %15 {strides = array<i32>} : memref<1x8x32xbf16, #tpu.memory_space<vmem>>, vector<1x8x32xbf16>,
    %16 = arith.truncf %11 : vector<8x32xf32> to vector<8x32xbf16>
    %c0_14 = arith.constant 0 : index
    %c0_15 = arith.constant 0 : index
    %c0_16 = arith.constant 0 : index
    %17 = vector.load %arg7[%c0_14, %c0_15, %c0_16] : memref<1x8x32xbf16, #tpu.memory_space<vmem>>, vector<1x8x32xbf16>
    %18 = vector.shape_cast %17 : vector<1x8x32xbf16> to vector<8x32xbf16>
    %19 = vector.shape_cast %16 : vector<8x32xbf16> to vector<1x8x32xbf16>
    tpu.vector_store %arg7[%c0_14, %c0_15, %c0_16], %19 {strides = array<i32>} : memref<1x8x32xbf16, #tpu.memory_space<vmem>>, vector<1x8x32xbf16>,
    return
  }
  func.func @transform_0(%arg0: i32) -> (i32, i32, i32) {
    %c0_i32 = arith.constant 0 : i32
    %c0_i32_0 = arith.constant 0 : i32
    %c0_i32_1 = arith.constant 0 : i32
    return %arg0, %c0_i32, %c0_i32_0 : i32, i32, i32
  }
  func.func @transform_1(%arg0: i32) -> (i32, i32) {
    %c0_i32 = arith.constant 0 : i32
    %c0_i32_0 = arith.constant 0 : i32
    %c0_i32_1 = arith.constant 0 : i32
    return %c0_i32, %c0_i32_0 : i32, i32
  }
  func.func @transform_2(%arg0: i32) -> (i32, i32) {
    %c0_i32 = arith.constant 0 : i32
    %c0_i32_0 = arith.constant 0 : i32
    %c0_i32_1 = arith.constant 0 : i32
    return %c0_i32, %c0_i32_0 : i32, i32
  }
  func.func @transform_3(%arg0: i32) -> (i32, i32) {
    %c0_i32 = arith.constant 0 : i32
    %c0_i32_0 = arith.constant 0 : i32
    %c0_i32_1 = arith.constant 0 : i32
    return %c0_i32, %c0_i32_0 : i32, i32
  }
  func.func @transform_4(%arg0: i32) -> (i32, i32) {
    %c0_i32 = arith.constant 0 : i32
    %c0_i32_0 = arith.constant 0 : i32
    %c0_i32_1 = arith.constant 0 : i32
    return %c0_i32, %c0_i32_0 : i32, i32
  }
  func.func @transform_5(%arg0: i32) -> (i32, i32, i32) {
    %c0_i32 = arith.constant 0 : i32
    %c0_i32_0 = arith.constant 0 : i32
    %c0_i32_1 = arith.constant 0 : i32
    return %arg0, %c0_i32, %c0_i32_0 : i32, i32, i32
  }
  func.func @transform_6(%arg0: i32) -> (i32, i32, i32) {
    %c0_i32 = arith.constant 0 : i32
    %c0_i32_0 = arith.constant 0 : i32
    %c0_i32_1 = arith.constant 0 : i32
    return %arg0, %c0_i32, %c0_i32_0 : i32, i32, i32
  }
}

</mosaic_0001>

<llo_original>
// kernel: tpu_custom_call.1
$region0: #{tpu_custom_call.1}
  #allocation0 [shape = 'u32[]', space=smem, size = 0x4, offset = 0x4, fixed_abs, tag = 'smem constant byte address 0x4 - core index']
  #allocation1 [shape = 'u32[144,128]{1,0:T(1,128)}', space=vmem, size = 0x12000, scoped, tag = 'internal scratch']
  %s0 = inlined_call_operand.hbm [shape: bf16[2,8,32], index: 0, kind: input, shape index: {}]
  %s1 = inlined_call_operand.hbm [shape: bf16[32,32], index: 1, kind: input, shape index: {}]
  %s2 = inlined_call_operand.vmem [shape: f32[1,32], index: 2, kind: input, shape index: {}]
  %s3 = inlined_call_operand.hbm [shape: bf16[32,32], index: 3, kind: input, shape index: {}]
  %s4 = inlined_call_operand.vmem [shape: f32[1,32], index: 4, kind: input, shape index: {}]
  %s5 = inlined_call_operand.hbm [shape: bf16[2,8,32], index: 5, kind: output, shape index: {0}]
  %s6 = inlined_call_operand.hbm [shape: bf16[2,8,32], index: 6, kind: output, shape index: {1}]
  %7 = xla_tuple %s5, %s6
  %s8 = sld [smem:[#allocation0]]
  $region73: #{tpu_custom_call.1} parent=0
    _
  %s10 = ssub.s32 1, %s8
  %s11 = scalar_select 0, %s10, %s8
  $region1: #{tpu_custom_call.1} parent=0
    #allocation2 [shape = 'u8[4096]{0}', space=vmem, size = 0x1000, scoped, tag = 'input window, operand 0']
    #allocation3 [shape = 's32[2]{0}', space=sflag, size = 0x8, scoped, tag = 'scoped memory for tpu_custom_call.1']
    #allocation4 [shape = 's32[2]{0}', space=sflag, size = 0x8, scoped, tag = 'scoped memory for tpu_custom_call.1']
    #allocation5 [shape = 'u8[8192]{0}', space=vmem, size = 0x2000, scoped, tag = 'input window, operand 1, single buffered']
    #allocation6 [shape = 's32[1]{0}', space=sflag, size = 0x4, scoped, tag = 'scoped memory for tpu_custom_call.1']
    #allocation7 [shape = 'u8[8192]{0}', space=vmem, size = 0x2000, scoped, tag = 'input window, operand 3, single buffered']
    #allocation8 [shape = 'u8[4096]{0}', space=vmem, size = 0x1000, scoped, tag = 'output window, operand 0']
    #allocation9 [shape = 'u8[4096]{0}', space=vmem, size = 0x1000, scoped, tag = 'output window, operand 1']
    #allocation10 [shape = 's32[2]{0}', space=sflag, size = 0x8, scoped, tag = 'scoped memory for tpu_custom_call.1']
    %12 = vsyncpa [#allocation3], 0
    %s13 = scalar_lea.sflag [#allocation3], 1
    %14 = vsyncpa %s13, 0
    %15 = vsyncpa [#allocation6], 0
    %16 = vsyncpa [#allocation4], 0
    %s17 = scalar_lea.sflag [#allocation4], 1
    %18 = vsyncpa %s17, 0
    %19 = vsyncpa [#allocation10], 0
    %s20 = scalar_lea.sflag [#allocation10], 1
    %21 = vsyncpa %s20, 0
    loop: start=0, step=1, limit=4
    $region2: #{tpu_custom_call.1} parent=1 // loop_pre_header
      _
    $region3: #{tpu_custom_call.1} parent=1 // loop_header
      %s23 = sphi 0, %s27
      %p24 = scmp.ge.s32.totalorder %s23, 4
      %s33 = sphi 0, %s35
      %s36 = sphi 0, %s33
      %s37 = sphi 0, %s36
      %s53 = sphi 0, %s37
      %s57 = sphi 0, %s57
      %s59 = sphi 0, %s57
      %s60 = sphi 0, %s59
      %s74 = sphi 0, %s60
      %s78 = sphi 0, %s78
      %s80 = sphi 0, %s78
      %s81 = sphi 0, %s80
      %s95 = sphi 0, %s81
      %s99 = sphi 0, %s99
      %s101 = sphi 0, %s99
      %s102 = sphi 0, %s101
      %s116 = sphi 0, %s102
      %s120 = sphi 0, %s120
      %s122 = sphi 0, %s120
      %s123 = sphi 0, %s122
      %s137 = sphi 0, %s123
      %s143 = sphi 0, %s145
      %s146 = sphi 0, %s143
      %s147 = sphi 0, %s146
      %s163 = sphi 0, %s147
      %s169 = sphi 0, %s171
      %s172 = sphi 0, %s169
      %s173 = sphi 0, %s172
      %s189 = sphi 0, %s173
    $region4: #{tpu_custom_call.1} parent=1 // loop_header_branch
      %26 = sbr.rel (%p24) target = $region8
    $region5: #{tpu_custom_call.1} parent=1 // loop_body
      %s28 = ssub.s32 %s23, 1
      %s29 = ssub.s32 %s23, 2
      %s30 = sadd.s32 %s23, 1
      %s31 = ssub.s32 %s23, %s30
      %p32 = scmp.eq.s32.totalorder %s31, 0
      %s34 = sadd.s32 %s33, 1
      %s35 = scalar_select %p32, %s33, %s34
      %p38 = pneg %p32
      %p39 = scmp.eq.s32.totalorder %s23, 1
      %p40 = por %p38, %p39
      %p41 = scmp.ne.s32.totalorder %s33, %s36
      %p42 = scmp.eq.s32.totalorder %s23, 0
      %p43 = por %p41, %p42
      %p44 = scmp.ne.s32.totalorder %s33, %s36
      %p45 = scmp.eq.s32.totalorder %s28, 1
      %p46 = por %p44, %p45
      %p47 = scmp.ne.s32.totalorder %s36, %s37
      %p48 = scmp.eq.s32.totalorder %s28, 0
      %p49 = por %p47, %p48
      %p50 = scmp.ne.s32.totalorder %s36, %s37
      %p51 = scmp.eq.s32.totalorder %s29, 1
      %p52 = por %p50, %p51
      %p54 = scmp.ne.s32.totalorder %s37, %s53
      %p55 = scmp.eq.s32.totalorder %s29, 0
      %p56 = por %p54, %p55
      %s58 = sadd.s32 %s57, 1
      %p61 = scmp.eq.s32.totalorder %s23, 1
      %p62 = scmp.ne.s32.totalorder %s57, %s59
      %p63 = scmp.eq.s32.totalorder %s23, 0
      %p64 = por %p62, %p63
      %p65 = scmp.ne.s32.totalorder %s57, %s59
      %p66 = scmp.eq.s32.totalorder %s28, 1
      %p67 = por %p65, %p66
      %p68 = scmp.ne.s32.totalorder %s59, %s60
      %p69 = scmp.eq.s32.totalorder %s28, 0
      %p70 = por %p68, %p69
      %p71 = scmp.ne.s32.totalorder %s59, %s60
      %p72 = scmp.eq.s32.totalorder %s29, 1
      %p73 = por %p71, %p72
      %p75 = scmp.ne.s32.totalorder %s60, %s74
      %p76 = scmp.eq.s32.totalorder %s29, 0
      %p77 = por %p75, %p76
      %s79 = sadd.s32 %s78, 1
      %p82 = scmp.eq.s32.totalorder %s23, 1
      %p83 = scmp.ne.s32.totalorder %s78, %s80
      %p84 = scmp.eq.s32.totalorder %s23, 0
      %p85 = por %p83, %p84
      %p86 = scmp.ne.s32.totalorder %s78, %s80
      %p87 = scmp.eq.s32.totalorder %s28, 1
      %p88 = por %p86, %p87
      %p89 = scmp.ne.s32.totalorder %s80, %s81
      %p90 = scmp.eq.s32.totalorder %s28, 0
      %p91 = por %p89, %p90
      %p92 = scmp.ne.s32.totalorder %s80, %s81
      %p93 = scmp.eq.s32.totalorder %s29, 1
      %p94 = por %p92, %p93
      %p96 = scmp.ne.s32.totalorder %s81, %s95
      %p97 = scmp.eq.s32.totalorder %s29, 0
      %p98 = por %p96, %p97
      %s100 = sadd.s32 %s99, 1
      %p103 = scmp.eq.s32.totalorder %s23, 1
      %p104 = scmp.ne.s32.totalorder %s99, %s101
      %p105 = scmp.eq.s32.totalorder %s23, 0
      %p106 = por %p104, %p105
      %p107 = scmp.ne.s32.totalorder %s99, %s101
      %p108 = scmp.eq.s32.totalorder %s28, 1
      %p109 = por %p107, %p108
      %p110 = scmp.ne.s32.totalorder %s101, %s102
      %p111 = scmp.eq.s32.totalorder %s28, 0
      %p112 = por %p110, %p111
      %p113 = scmp.ne.s32.totalorder %s101, %s102
      %p114 = scmp.eq.s32.totalorder %s29, 1
      %p115 = por %p113, %p114
      %p117 = scmp.ne.s32.totalorder %s102, %s116
      %p118 = scmp.eq.s32.totalorder %s29, 0
      %p119 = por %p117, %p118
      %s121 = sadd.s32 %s120, 1
      %p124 = scmp.eq.s32.totalorder %s23, 1
      %p125 = scmp.ne.s32.totalorder %s120, %s122
      %p126 = scmp.eq.s32.totalorder %s23, 0
      %p127 = por %p125, %p126
      %p128 = scmp.ne.s32.totalorder %s120, %s122
      %p129 = scmp.eq.s32.totalorder %s28, 1
      %p130 = por %p128, %p129
      %p131 = scmp.ne.s32.totalorder %s122, %s123
      %p132 = scmp.eq.s32.totalorder %s28, 0
      %p133 = por %p131, %p132
      %p134 = scmp.ne.s32.totalorder %s122, %s123
      %p135 = scmp.eq.s32.totalorder %s29, 1
      %p136 = por %p134, %p135
      %p138 = scmp.ne.s32.totalorder %s123, %s137
      %p139 = scmp.eq.s32.totalorder %s29, 0
      %p140 = por %p138, %p139
      %s141 = ssub.s32 %s23, %s30
      %p142 = scmp.eq.s32.totalorder %s141, 0
      %s144 = sadd.s32 %s143, 1
      %s145 = scalar_select %p142, %s143, %s144
      %p148 = pneg %p142
      %p149 = scmp.eq.s32.totalorder %s23, 1
      %p150 = por %p148, %p149
      %p151 = scmp.ne.s32.totalorder %s143, %s146
      %p152 = scmp.eq.s32.totalorder %s23, 0
      %p153 = por %p151, %p152
      %p154 = scmp.ne.s32.totalorder %s143, %s146
      %p155 = scmp.eq.s32.totalorder %s28, 1
      %p156 = por %p154, %p155
      %p157 = scmp.ne.s32.totalorder %s146, %s147
      %p158 = scmp.eq.s32.totalorder %s28, 0
      %p159 = por %p157, %p158
      %p160 = scmp.ne.s32.totalorder %s146, %s147
      %p161 = scmp.eq.s32.totalorder %s29, 1
      %p162 = por %p160, %p161
      %p164 = scmp.ne.s32.totalorder %s147, %s163
      %p165 = scmp.eq.s32.totalorder %s29, 0
      %p166 = por %p164, %p165
      %s167 = ssub.s32 %s23, %s30
      %p168 = scmp.eq.s32.totalorder %s167, 0
      %s170 = sadd.s32 %s169, 1
      %s171 = scalar_select %p168, %s169, %s170
      %p174 = pneg %p168
      %p175 = scmp.eq.s32.totalorder %s23, 1
      %p176 = por %p174, %p175
      %p177 = scmp.ne.s32.totalorder %s169, %s172
      %p178 = scmp.eq.s32.totalorder %s23, 0
      %p179 = por %p177, %p178
      %p180 = scmp.ne.s32.totalorder %s169, %s172
      %p181 = scmp.eq.s32.totalorder %s28, 1
      %p182 = por %p180, %p181
      %p183 = scmp.ne.s32.totalorder %s172, %s173
      %p184 = scmp.eq.s32.totalorder %s28, 0
      %p185 = por %p183, %p184
      %p186 = scmp.ne.s32.totalorder %s172, %s173
      %p187 = scmp.eq.s32.totalorder %s29, 1
      %p188 = por %p186, %p187
      %p190 = scmp.ne.s32.totalorder %s173, %s189
      %p191 = scmp.eq.s32.totalorder %s29, 0
      %p192 = por %p190, %p191
      %p193 = scmp.le.s32.totalorder 1, %s23
      %p194 = scmp.lt.s32.totalorder %s23, 3
      %p195 = pnand %p193, %p194
      %p196 = pneg %p195
      // Predicated region
      $region9: #{tpu_custom_call.1} parent=5 // pred_check
        _
      $region10: #{tpu_custom_call.1} parent=5 // pred_check_branch
        %198 = sbr.rel (%p195) target = $region12
      $region11: #{tpu_custom_call.1} parent=5 // pred_region
        %s199 = ssub.s32 %s23, 1
        // Predicated region
        $region13: #{tpu_custom_call.1} parent=11 // pred_check
          %p200 = pneg %p70
        $region14: #{tpu_custom_call.1} parent=11 // pred_check_branch
          %202 = sbr.rel (%p200) target = $region16
        $region15: #{tpu_custom_call.1} parent=11 // pred_region
          %s204 = ssub.s32 256, 256
          %205 = vsyncadd [#allocation6], %s204
          %s206 = sshll.u32 [#allocation5], 4
          %s207 = int_to_ptr.vmem [resolvable:$true] %s206
          %212 = dma.hbm_to_vmem [thread:$0]  %s1, 256, %s207, [#allocation6], 64, 64, 4
        $region16: #{tpu_custom_call.1} parent=11 // pred_fallthru
          _
        // Predicated region
        $region17: #{tpu_custom_call.1} parent=11 // pred_check
          %p213 = pneg %p91
        $region18: #{tpu_custom_call.1} parent=11 // pred_check_branch
          %215 = sbr.rel (%p213) target = $region20
        $region19: #{tpu_custom_call.1} parent=11 // pred_region
          _
        $region20: #{tpu_custom_call.1} parent=11 // pred_fallthru
          _
        // Predicated region
        $region21: #{tpu_custom_call.1} parent=11 // pred_check
          %p216 = pneg %p112
        $region22: #{tpu_custom_call.1} parent=11 // pred_check_branch
          %218 = sbr.rel (%p216) target = $region24
        $region23: #{tpu_custom_call.1} parent=11 // pred_region
          %s220 = ssub.s32 256, 256
          %221 = vsyncadd [#allocation6], %s220
          %s222 = sshll.u32 [#allocation7], 4
          %s223 = int_to_ptr.vmem [resolvable:$true] %s222
          %228 = dma.hbm_to_vmem [thread:$0]  %s3, 256, %s223, [#allocation6], 64, 64, 4
        $region24: #{tpu_custom_call.1} parent=11 // pred_fallthru
          _
        // Predicated region
        $region25: #{tpu_custom_call.1} parent=11 // pred_check
          %p229 = pneg %p133
        $region26: #{tpu_custom_call.1} parent=11 // pred_check_branch
          %231 = sbr.rel (%p229) target = $region28
        $region27: #{tpu_custom_call.1} parent=11 // pred_region
          _
        $region28: #{tpu_custom_call.1} parent=11 // pred_fallthru
          _
      $region12: #{tpu_custom_call.1} parent=5 // pred_fallthru
        _
      %p232 = scmp.lt.s32.totalorder %s23, 2
      // Predicated region
      $region29: #{tpu_custom_call.1} parent=5 // pred_check
        %p233 = pneg %p232
      $region30: #{tpu_custom_call.1} parent=5 // pred_check_branch
        %235 = sbr.rel (%p233) target = $region32
      $region31: #{tpu_custom_call.1} parent=5 // pred_region
        // Predicated region
        $region33: #{tpu_custom_call.1} parent=31 // pred_check
          %p236 = pneg %p43
        $region34: #{tpu_custom_call.1} parent=31 // pred_check_branch
          %238 = sbr.rel (%p236) target = $region36
        $region35: #{tpu_custom_call.1} parent=31 // pred_region
          %s239 = sand.u32 %s33, 1
          %s240 = scalar_lea.sflag [#allocation3], %s239
          %s241 = sand.u32 %s33, 1
          %s242 = smul.addr %s241, 4
          %s243 = scalar_lea.vmem [#allocation2], %s242
          %s245 = ssub.s32 64, 64
          %246 = vsyncadd %s240, %s245
          %s247 = smul.addr %s23, 64
          %s248 = scalar_lea.hbm %s0, %s247
          %s250 = sshll.u32 %s243, 4
          %s251 = int_to_ptr.vmem [resolvable:$true] %s250
          %253 = dma.hbm_to_vmem [thread:$0]  %s248, 64, %s251, %s240
        $region36: #{tpu_custom_call.1} parent=31 // pred_fallthru
          _
      $region32: #{tpu_custom_call.1} parent=5 // pred_fallthru
        _
      %p254 = scmp.le.s32.totalorder 1, %s23
      %p255 = scmp.lt.s32.totalorder %s23, 3
      %p256 = pnand %p254, %p255
      %p257 = pneg %p256
      // Predicated region
      $region37: #{tpu_custom_call.1} parent=5 // pred_check
        _
      $region38: #{tpu_custom_call.1} parent=5 // pred_check_branch
        %259 = sbr.rel (%p256) target = $region40
      $region39: #{tpu_custom_call.1} parent=5 // pred_region
        %s260 = ssub.s32 %s23, 1
        %s261 = sand.u32 %s36, 1
        %s262 = scalar_lea.sflag [#allocation3], %s261
        %s263 = sand.u32 %s36, 1
        %s264 = smul.addr %s263, 4
        %s265 = scalar_lea.vmem [#allocation2], %s264
        // Predicated region
        $region41: #{tpu_custom_call.1} parent=39 // pred_check
          %p266 = pneg %p49
        $region42: #{tpu_custom_call.1} parent=39 // pred_check_branch
          %268 = sbr.rel (%p266) target = $region44
        $region43: #{tpu_custom_call.1} parent=39 // pred_region
          %269 = dma.done %s262, 64
        $region44: #{tpu_custom_call.1} parent=39 // pred_fallthru
          _
        // Predicated region
        $region45: #{tpu_custom_call.1} parent=39 // pred_check
          %p270 = pneg %p70
        $region46: #{tpu_custom_call.1} parent=39 // pred_check_branch
          %272 = sbr.rel (%p270) target = $region48
        $region47: #{tpu_custom_call.1} parent=39 // pred_region
          %273 = dma.done [#allocation6], 256
        $region48: #{tpu_custom_call.1} parent=39 // pred_fallthru
          _
        // Predicated region
        $region49: #{tpu_custom_call.1} parent=39 // pred_check
          %p274 = pneg %p112
        $region50: #{tpu_custom_call.1} parent=39 // pred_check_branch
          %276 = sbr.rel (%p274) target = $region52
        $region51: #{tpu_custom_call.1} parent=39 // pred_region
          %277 = dma.done [#allocation6], 256
        $region52: #{tpu_custom_call.1} parent=39 // pred_fallthru
          _
        %s278 = sand.u32 %s36, 1
        %s279 = scalar_lea.sflag [#allocation3], %s278
        %s280 = sand.u32 %s36, 1
        %s281 = smul.addr %s280, 4
        %s282 = scalar_lea.vmem [#allocation2], %s281
        %p283 = pneg %p49
        %p284 = pneg %p46
        %p285 = pneg %p70
        %p286 = pneg %p67
        %p287 = pneg %p91
        %p288 = pneg %p88
        %p289 = pneg %p112
        %p290 = pneg %p109
        %p291 = pneg %p133
        %p292 = pneg %p130
        %p293 = pneg %p159
        %p294 = pneg %p156
        %s295 = sand.u32 %s146, 1
        %s296 = scalar_lea.sflag [#allocation4], %s295
        %s297 = sand.u32 %s146, 1
        %s298 = smul.addr %s297, 4
        %s299 = scalar_lea.vmem [#allocation8], %s298
        %p300 = pneg %p185
        %p301 = pneg %p182
        %s302 = sand.u32 %s172, 1
        %s303 = scalar_lea.sflag [#allocation10], %s302
        %s304 = sand.u32 %s172, 1
        %s305 = smul.addr %s304, 4
        %s306 = scalar_lea.vmem [#allocation9], %s305
        %v308 = vld [vmem:[%s265] sm:$0xf]
        %v309 = vld [vmem:[#allocation5] sm:$0xf]
        %v310 = vld [vmem:[#allocation5 + $0x4] sm:$0xf]
        %v311 = vld [vmem:[#allocation5 + $0x8] sm:$0xf]
        %v312 = vld [vmem:[#allocation5 + $0xc] sm:$0xf]
        %v313 = vld [vmem:[%s2] sm:$0x1]
        %v315 = vlaneseq
        %v316 = vshrl.u32 %v315, 7
        %v317 = vsub.s32 0, %v316
        %v318 = vrot.slane %v313, %v317
        %v324 = vunpack.c.l.b16 %v309
        %v325 = vunpack.c.l.b16 %v310
        %v326 = vunpack.c.l.b16 %v311
        %v327 = vunpack.c.l.b16 %v312
        %v328 = vpack.c.b16 %v325, %v324
        %v329 = vpack.c.b16 %v327, %v326
        %vm332 = vcmask 261120
        %v334 = vsel %vm332, %v308, 0
        %336 = vmatprep.subr.bf16.mxu0 0
        %337 = vmatpush1.bf16.msra.mxu0 %v328
        %338 = vmatprep.subr.bf16.mxu0 0
        %339 = vmatpush1.bf16.msra.mxu0 %v329
        %340 = vmatprep.subr.bf16.mxu0 0
        %341 = vmatpush1.bf16.msra.mxu0 0
        %342 = vmatprep.subr.bf16.mxu0 0
        %343 = vmatpush1.bf16.msra.mxu0 0
        %344 = vmatprep.subr.bf16.mxu0 0
        %345 = vmatpush1.bf16.msra.mxu0 0
        %346 = vmatprep.subr.bf16.mxu0 0
        %347 = vmatpush1.bf16.msra.mxu0 0
        %348 = vmatprep.subr.bf16.mxu0 0
        %349 = vmatpush1.bf16.msra.mxu0 0
        %350 = vmatprep.subr.bf16.mxu0 0
        %351 = vmatpush1.bf16.msra.mxu0 0
        %352 = vmatprep.subr.bf16.mxu0 0
        %353 = vmatpush1.bf16.msra.mxu0 0
        %354 = vmatprep.subr.bf16.mxu0 0
        %355 = vmatpush1.bf16.msra.mxu0 0
        %356 = vmatprep.subr.bf16.mxu0 0
        %357 = vmatpush1.bf16.msra.mxu0 0
        %358 = vmatprep.subr.bf16.mxu0 0
        %359 = vmatpush1.bf16.msra.mxu0 0
        %360 = vmatprep.subr.bf16.mxu0 0
        %361 = vmatpush1.bf16.msra.mxu0 0
        %362 = vmatprep.subr.bf16.mxu0 0
        %363 = vmatpush1.bf16.msra.mxu0 0
        %364 = vmatprep.subr.bf16.mxu0 0
        %365 = vmatpush1.bf16.msra.mxu0 0
        %366 = vmatprep.subr.bf16.mxu0 0
        %367 = vmatpush1.bf16.msra.mxu0 0
        %368 = vmatprep.mubr.bf16.mxu0 0
        %369 = vmatmul.mubr.bf16.gmra.mrb[0].mxu0 %v334
        %v370 = vpop.f32.mrb[0].mxu0
        %v371 = vadd.f32 %v318, %v370
        %v372 = vpop.f32.mrb[0].mxu0
        %v373 = vpop.f32.mrb[0].mxu0
        %v374 = vpop.f32.mrb[0].mxu0
        %375 = vdwg.mxu0
        %v376 = vld [vmem:[#allocation7] sm:$0xf]
        %v377 = vld [vmem:[#allocation7 + $0x4] sm:$0xf]
        %v378 = vld [vmem:[#allocation7 + $0x8] sm:$0xf]
        %v379 = vld [vmem:[#allocation7 + $0xc] sm:$0xf]
        %v380 = vld [vmem:[%s4] sm:$0x1]
        %v382 = vlaneseq
        %v383 = vshrl.u32 %v382, 7
        %v384 = vsub.s32 0, %v383
        %v385 = vrot.slane %v380, %v384
        %v391 = vunpack.c.l.b16 %v376
        %v392 = vunpack.c.l.b16 %v377
        %v393 = vunpack.c.l.b16 %v378
        %v394 = vunpack.c.l.b16 %v379
        %v395 = vpack.c.b16 %v392, %v391
        %v396 = vpack.c.b16 %v394, %v393
        %399 = vmatprep.subr.bf16.mxu0 0
        %400 = vmatpush1.bf16.msra.mxu0 %v395
        %401 = vmatprep.subr.bf16.mxu0 0
        %402 = vmatpush1.bf16.msra.mxu0 %v396
        %403 = vmatprep.subr.bf16.mxu0 0
        %404 = vmatpush1.bf16.msra.mxu0 0
        %405 = vmatprep.subr.bf16.mxu0 0
        %406 = vmatpush1.bf16.msra.mxu0 0
        %407 = vmatprep.subr.bf16.mxu0 0
        %408 = vmatpush1.bf16.msra.mxu0 0
        %409 = vmatprep.subr.bf16.mxu0 0
        %410 = vmatpush1.bf16.msra.mxu0 0
        %411 = vmatprep.subr.bf16.mxu0 0
        %412 = vmatpush1.bf16.msra.mxu0 0
        %413 = vmatprep.subr.bf16.mxu0 0
        %414 = vmatpush1.bf16.msra.mxu0 0
        %415 = vmatprep.subr.bf16.mxu0 0
        %416 = vmatpush1.bf16.msra.mxu0 0
        %417 = vmatprep.subr.bf16.mxu0 0
        %418 = vmatpush1.bf16.msra.mxu0 0
        %419 = vmatprep.subr.bf16.mxu0 0
        %420 = vmatpush1.bf16.msra.mxu0 0
        %421 = vmatprep.subr.bf16.mxu0 0
        %422 = vmatpush1.bf16.msra.mxu0 0
        %423 = vmatprep.subr.bf16.mxu0 0
        %424 = vmatpush1.bf16.msra.mxu0 0
        %425 = vmatprep.subr.bf16.mxu0 0
        %426 = vmatpush1.bf16.msra.mxu0 0
        %427 = vmatprep.subr.bf16.mxu0 0
        %428 = vmatpush1.bf16.msra.mxu0 0
        %429 = vmatprep.subr.bf16.mxu0 0
        %430 = vmatpush1.bf16.msra.mxu0 0
        %431 = vmatprep.mubr.bf16.mxu0 0
        %432 = vmatmul.mubr.bf16.gmra.mrb[0].mxu0 %v334
        %v433 = vpop.f32.mrb[0].mxu0
        %v434 = vadd.f32 %v385, %v433
        %v435 = vpop.f32.mrb[0].mxu0
        %v436 = vpop.f32.mrb[0].mxu0
        %v437 = vpop.f32.mrb[0].mxu0
        %438 = vdwg.mxu0
        %v439 = vpack.c.bf16 %v371, %v371
        %vm440 = vcmask 257024
        %441 = vst.msk [vmem:[%s299] sm:$0xf] %vm440, %v439
        %v442 = vpack.c.bf16 %v434, %v434
        %443 = vst.msk [vmem:[%s306] sm:$0xf] %vm440, %v442
        %s444 = sand.u32 %s146, 1
        %s445 = scalar_lea.sflag [#allocation4], %s444
        %s446 = sand.u32 %s146, 1
        %s447 = smul.addr %s446, 4
        %s448 = scalar_lea.vmem [#allocation8], %s447
        %s449 = sand.u32 %s172, 1
        %s450 = scalar_lea.sflag [#allocation10], %s449
        %s451 = sand.u32 %s172, 1
        %s452 = smul.addr %s451, 4
        %s453 = scalar_lea.vmem [#allocation9], %s452
        // Predicated region
        $region53: #{tpu_custom_call.1} parent=39 // pred_check
          %p454 = pneg %p156
        $region54: #{tpu_custom_call.1} parent=39 // pred_check_branch
          %456 = sbr.rel (%p454) target = $region56
        $region55: #{tpu_custom_call.1} parent=39 // pred_region
          %s458 = ssub.s32 64, 64
          %459 = vsyncadd %s445, %s458
          %s460 = smul.addr %s28, 64
          %s461 = scalar_lea.hbm %s5, %s460
          %s463 = sshll.u32 %s448, 4
          %s464 = int_to_ptr.vmem [resolvable:$true] %s463
          %466 = dma.vmem_to_hbm [thread:$0]  %s464, 64, %s461, %s445
        $region56: #{tpu_custom_call.1} parent=39 // pred_fallthru
          _
        // Predicated region
        $region57: #{tpu_custom_call.1} parent=39 // pred_check
          %p467 = pneg %p182
        $region58: #{tpu_custom_call.1} parent=39 // pred_check_branch
          %469 = sbr.rel (%p467) target = $region60
        $region59: #{tpu_custom_call.1} parent=39 // pred_region
          %s471 = ssub.s32 64, 64
          %472 = vsyncadd %s450, %s471
          %s473 = smul.addr %s28, 64
          %s474 = scalar_lea.hbm %s6, %s473
          %s476 = sshll.u32 %s453, 4
          %s477 = int_to_ptr.vmem [resolvable:$true] %s476
          %479 = dma.vmem_to_hbm [thread:$0]  %s477, 64, %s474, %s450
        $region60: #{tpu_custom_call.1} parent=39 // pred_fallthru
          _
      $region40: #{tpu_custom_call.1} parent=5 // pred_fallthru
        _
      %p480 = scmp.le.s32.totalorder 2, %s23
      // Predicated region
      $region61: #{tpu_custom_call.1} parent=5 // pred_check
        %p481 = pneg %p480
      $region62: #{tpu_custom_call.1} parent=5 // pred_check_branch
        %483 = sbr.rel (%p481) target = $region64
      $region63: #{tpu_custom_call.1} parent=5 // pred_region
        %s484 = ssub.s32 %s23, 2
        // Predicated region
        $region65: #{tpu_custom_call.1} parent=63 // pred_check
          %p485 = pneg %p162
        $region66: #{tpu_custom_call.1} parent=63 // pred_check_branch
          %487 = sbr.rel (%p485) target = $region68
        $region67: #{tpu_custom_call.1} parent=63 // pred_region
          %s488 = sand.u32 %s147, 1
          %s489 = scalar_lea.sflag [#allocation4], %s488
          %s490 = sand.u32 %s147, 1
          %s491 = smul.addr %s490, 4
          %s492 = scalar_lea.vmem [#allocation8], %s491
          %493 = dma.done %s489, 64
        $region68: #{tpu_custom_call.1} parent=63 // pred_fallthru
          _
        // Predicated region
        $region69: #{tpu_custom_call.1} parent=63 // pred_check
          %p494 = pneg %p188
        $region70: #{tpu_custom_call.1} parent=63 // pred_check_branch
          %496 = sbr.rel (%p494) target = $region72
        $region71: #{tpu_custom_call.1} parent=63 // pred_region
          %s497 = sand.u32 %s173, 1
          %s498 = scalar_lea.sflag [#allocation10], %s497
          %s499 = sand.u32 %s173, 1
          %s500 = smul.addr %s499, 4
          %s501 = scalar_lea.vmem [#allocation9], %s500
          %502 = dma.done %s498, 64
        $region72: #{tpu_custom_call.1} parent=63 // pred_fallthru
          _
      $region64: #{tpu_custom_call.1} parent=5 // pred_fallthru
        _
    $region6: #{tpu_custom_call.1} parent=1 // loop_footer
      %s27 = sadd.s32 1, %s23
    $region7: #{tpu_custom_call.1} parent=1 // loop_footer_branch
      %22 = sbr.rel target = $region3
    $region8: #{tpu_custom_call.1} parent=1 // loop_exit
      _
    %503 = vsyncpa [#allocation3], 1
    %s504 = scalar_lea.sflag [#allocation3], 1
    %505 = vsyncpa %s504, 1
    %506 = vsyncpa [#allocation6], 1
    %507 = vsyncpa [#allocation4], 1
    %s508 = scalar_lea.sflag [#allocation4], 1
    %509 = vsyncpa %s508, 1
    %510 = vsyncpa [#allocation10], 1
    %s511 = scalar_lea.sflag [#allocation10], 1
    %512 = vsyncpa %s511, 1

</llo_original>
